<compile_context>
chip_gen: v5e
topology: v5e:2x2
jax: 0.10.0
libtpu: 0.0.40
codegen_flags: <defaults>
</compile_context>

<pallas_src>
import functools
import math

import jax
import jax.numpy as jnp
from jax.experimental import pallas as pl
from jax.experimental.pallas import tpu as pltpu

_LANES = 128
_MAX_TILE_ROWS = 4096                 # 4096 x 128 f32 = 2 MiB per tile
_MAX_TILE_BYTES = 2 * 1024 * 1024     # target per-tile size for the fallback path
_VMEM_LIMIT_BYTES = 32 * 1024 * 1024  # safe on v5e/v6e (128 MiB) and v7x (64 MiB)


def _add_pe_kernel(x_ref, pe_ref, o_ref):
    """Pure elementwise add: out = patches_tile + pe_tile (all same block shape)."""
    o_ref[...] = x_ref[...] + pe_ref[...]


def _extract_patches(x, patch_size):
    """JAX glue replicating torch unfold/permute/view ordering. x: (B,C,D,H,W)."""
    B, C, D, H, W = x.shape
    pD, pH, pW = patch_size
    nD, nH, nW = D // pD, H // pH, W // pW
    num_patches = nD * nH * nW
    patch_vol = pD * pH * pW

    p = x.reshape(B, C, nD, pD, nH, pH, nW, pW)
    # -> (B, C, nD, nH, nW, pD, pH, pW), matching x.unfold(2).unfold(3).unfold(4)
    p = p.transpose(0, 1, 2, 4, 6, 3, 5, 7)
    p = p.reshape(B, C, num_patches, patch_vol)
    # permute(0, 2, 1, 3).view(B, num_patches, C * patch_vol)
    p = p.transpose(0, 2, 1, 3).reshape(B, num_patches, C * patch_vol)
    return p


def _sinusoidal_encoding(num_positions, embedding_dim):
    """Same math as generate_sinusoidal_encoding (float32), computed once."""
    assert embedding_dim % 2 == 0, (
        "sinusoidal encoding requires an even embedding_dim "
        f"(got {embedding_dim})")
    position = jnp.arange(num_positions, dtype=jnp.float32)[:, None]
    div_term = jnp.exp(jnp.arange(0, embedding_dim, 2, dtype=jnp.float32)
                       * (-math.log(10000.0) / float(embedding_dim)))
    pe = jnp.zeros((num_positions, embedding_dim), jnp.float32)
    pe = pe.at[:, 0::2].set(jnp.sin(position * div_term))
    pe = pe.at[:, 1::2].set(jnp.cos(position * div_term))
    return pe


def _largest_aligned_divisor(n, cap, align=8):
    """Largest divisor of n that is a multiple of `align` and <= cap, or None."""
    best = None
    i = 1
    while i * i <= n:
        if n % i == 0:
            for d in (i, n // i):
                if d <= cap and d % align == 0 and (best is None or d > best):
                    best = d
        i += 1
    return best


def _choose_tile_rows(rows, batch, cap):
    """Row-tile size: prefer an exact multiple-of-8 divisor (no ragged tile)."""
    if rows <= cap:
        if batch == 1 and rows % 8 == 0 and rows >= 16:
            # Split into >=2 row blocks so both megacore TensorCores get work.
            half = _largest_aligned_divisor(rows, rows // 2)
            if half is not None:
                return half
        return rows  # block == full dim is always legal
    d = _largest_aligned_divisor(rows, cap)
    if d is not None:
        return d
    return cap  # cap is a multiple of 8; last tile is ragged (correct, masked)


def patch_embedding(x, patch_size=(2, 2, 2)):
    """PatchEmbedding.forward: (B,C,D,H,W) -> (B, num_patches, embed_dim)."""
    x = x.astype(jnp.float32)
    patches = _extract_patches(x, patch_size)          # (B, N, E)
    B, N, E = patches.shape
    pe = _sinusoidal_encoding(N, E)                    # (N, E)

    L = N * E
    if L % _LANES == 0:
        # Lane-dense path: flatten (N, E) -> (R, 128) rows (pure view), tile R.
        R = L // _LANES
        x_flat = patches.reshape(B, R, _LANES)
        pe_flat = pe.reshape(1, R, _LANES)

        tr = _choose_tile_rows(R, B, _MAX_TILE_ROWS)
        grid = (pl.cdiv(R, tr), B)  # batch innermost => PE tile stays VMEM-resident

        out = pl.pallas_call(
            _add_pe_kernel,
            out_shape=jax.ShapeDtypeStruct((B, R, _LANES), jnp.float32),
            grid_spec=pltpu.PrefetchScalarGridSpec(
                num_scalar_prefetch=0,
                grid=grid,
                in_specs=[
                    pl.BlockSpec((1, tr, _LANES), lambda r, b: (b, r, 0)),
                    pl.BlockSpec((1, tr, _LANES), lambda r, b: (0, r, 0)),
                ],
                out_specs=pl.BlockSpec((1, tr, _LANES), lambda r, b: (b, r, 0)),
            ),
            compiler_params=pltpu.CompilerParams(
                dimension_semantics=("parallel", "parallel"),
                vmem_limit_bytes=_VMEM_LIMIT_BYTES),
            input_output_aliases={0: 0},  # in-place on jit-internal patches buffer
        )(x_flat, pe_flat)
        return out.reshape(B, N, E)

    # Fallback (N*E not a multiple of 128): tile N so VMEM stays bounded even
    # for large volumes. E stays the (possibly lane-masked) last dim.
    cap_n = max(8, (_MAX_TILE_BYTES // (E * 4)) // 8 * 8)
    tn = _choose_tile_rows(N, B, cap_n)
    grid = (pl.cdiv(N, tn), B)
    return pl.pallas_call(
        _add_pe_kernel,
        out_shape=jax.ShapeDtypeStruct((B, N, E), jnp.float32),
        grid_spec=pltpu.PrefetchScalarGridSpec(
            num_scalar_prefetch=0,
            grid=grid,
            in_specs=[
                pl.BlockSpec((1, tn, E), lambda n, b: (b, n, 0)),
                pl.BlockSpec((1, tn, E), lambda n, b: (0, n, 0)),
            ],
            out_specs=pl.BlockSpec((1, tn, E), lambda n, b: (b, n, 0)),
        ),
        compiler_params=pltpu.CompilerParams(
            dimension_semantics=("parallel", "parallel"),
            vmem_limit_bytes=_VMEM_LIMIT_BYTES),
        input_output_aliases={0: 0},
    )(patches, pe[None])


def _reference(x, patch_size=(2, 2, 2)):
    """Pure-JAX reference reproducing the PyTorch semantics, for validation."""
    patches = _extract_patches(x.astype(jnp.float32), patch_size)
    B, N, E = patches.shape
    return patches + _sinusoidal_encoding(N, E)[None]


if __name__ == "__main__":
    # PatchEmbedding(patch_size=(2,2,2), in_channels=4): embed_dim = 8*4 = 32
    key = jax.random.PRNGKey(0)
    B, C, D, H, W = 2, 4, 8, 8, 8
    patch_size = (2, 2, 2)
    x = jax.random.normal(key, (B, C, D, H, W), dtype=jnp.float32)

    fn = jax.jit(functools.partial(patch_embedding, patch_size=patch_size))
    out = jax.block_until_ready(fn(x))

    ref = _reference(x, patch_size)
    num_patches = (D // 2) * (H // 2) * (W // 2)
    embed_dim = C * 8
    assert out.shape == (B, num_patches, embed_dim)
    assert jnp.allclose(out, ref, atol=1e-5, rtol=1e-5)

    print("KERNEL_OK")
</pallas_src>

<mosaic_0001>
module attributes {stable_mosaic.version = 11 : i64} {
  func.func @_add_pe_kernel(%arg0: i32, %arg1: i32, %arg2: memref<1x16x128xf32, #tpu.memory_space<vmem>>, %arg3: memref<1x16x128xf32, #tpu.memory_space<vmem>>, %arg4: memref<1x16x128xf32, #tpu.memory_space<vmem>>) attributes {dimension_semantics = [#tpu.dimension_semantics<parallel>, #tpu.dimension_semantics<parallel>], iteration_bounds = array<i64: 1, 2>, scalar_prefetch = 0 : i64, scratch_operands = 0 : i64, tpu.core_type = #tpu.core_type<tc>, window_params = [{transform_indices = @transform_0, window_bounds = array<i64: 1, 16, 128>}, {transform_indices = @transform_1, window_bounds = array<i64: 1, 16, 128>}, {transform_indices = @transform_2, window_bounds = array<i64: 1, 16, 128>}]} {
    %c0 = arith.constant 0 : index
    %c0_0 = arith.constant 0 : index
    %c0_1 = arith.constant 0 : index
    %0 = vector.load %arg2[%c0, %c0_0, %c0_1] : memref<1x16x128xf32, #tpu.memory_space<vmem>>, vector<1x16x128xf32>
    %c0_2 = arith.constant 0 : index
    %c0_3 = arith.constant 0 : index
    %c0_4 = arith.constant 0 : index
    %1 = vector.load %arg3[%c0_2, %c0_3, %c0_4] : memref<1x16x128xf32, #tpu.memory_space<vmem>>, vector<1x16x128xf32>
    %2 = arith.addf %0, %1 : vector<1x16x128xf32>
    %c0_5 = arith.constant 0 : index
    %c0_6 = arith.constant 0 : index
    %c0_7 = arith.constant 0 : index
    %3 = vector.load %arg4[%c0_5, %c0_6, %c0_7] : memref<1x16x128xf32, #tpu.memory_space<vmem>>, vector<1x16x128xf32>
    tpu.vector_store %arg4[%c0_5, %c0_6, %c0_7], %2 {strides = array<i32>} : memref<1x16x128xf32, #tpu.memory_space<vmem>>, vector<1x16x128xf32>,
    return
  }
  func.func @transform_0(%arg0: i32, %arg1: i32) -> (i32, i32, i32) {
    %c0_i32 = arith.constant 0 : i32
    %c0_i32_0 = arith.constant 0 : i32
    return %arg1, %arg0, %c0_i32 : i32, i32, i32
  }
  func.func @transform_1(%arg0: i32, %arg1: i32) -> (i32, i32, i32) {
    %c0_i32 = arith.constant 0 : i32
    %c0_i32_0 = arith.constant 0 : i32
    %c0_i32_1 = arith.constant 0 : i32
    return %c0_i32, %arg0, %c0_i32_0 : i32, i32, i32
  }
  func.func @transform_2(%arg0: i32, %arg1: i32) -> (i32, i32, i32) {
    %c0_i32 = arith.constant 0 : i32
    %c0_i32_0 = arith.constant 0 : i32
    return %arg1, %arg0, %c0_i32 : i32, i32, i32
  }
}

</mosaic_0001>

<llo_original>
// kernel: patch_embedding.1
$region0: #{patch_embedding.1}
  #allocation0 [shape = 'u32[]', space=smem, size = 0x4, offset = 0x4, fixed_abs, tag = 'smem constant byte address 0x4 - core index']
  #allocation1 [shape = 'u32[72,128]{1,0:T(1,128)}', space=vmem, size = 0x9000, scoped, tag = 'internal scratch']
  %s0 = inlined_call_operand.vmem [shape: f32[2,16,128], index: 0, kind: input, shape index: {}, may-alias: {0,2}]
  %s1 = inlined_call_operand.vmem [shape: f32[1,16,128], index: 1, kind: input, shape index: {}]
  %s2 = inlined_call_operand.vmem [shape: f32[2,16,128], index: 2, kind: output, shape index: {}, may-alias: {0,2}]
  %s3 = sld [smem:[#allocation0]]
  $region41: #{patch_embedding.1} parent=0
    _
  %s5 = ssub.s32 1, %s3
  %s6 = scalar_select 0, %s5, %s3
  loop: start=0, step=1, limit=4
  $region2: #{patch_embedding.1} parent=0 // loop_pre_header
    _
  $region3: #{patch_embedding.1} parent=0 // loop_header
    %s8 = sphi 0, %s12
    %p9 = scmp.ge.s32.totalorder %s8, 4
    %s15 = sphi 0, %s27
    %s16 = sphi 0, %s23
    %s17 = sphi 0, %s15
    %s18 = sphi 0, %s16
    %s19 = sphi 0, %s17
    %s20 = sphi 0, %s18
    %s32 = sphi 0, %s34
    %s35 = sphi 0, %s32
    %s36 = sphi 0, %s35
    %s52 = sphi 0, %s36
    %s58 = sphi 0, %s60
    %s61 = sphi 0, %s58
    %s62 = sphi 0, %s61
    %s78 = sphi 0, %s62
    %s86 = sphi 0, %s88
    %s89 = sphi 0, %s86
    %s90 = sphi 0, %s89
    %s106 = sphi 0, %s90
  $region4: #{patch_embedding.1} parent=0 // loop_header_branch
    %11 = sbr.rel (%p9) target = $region8
  $region5: #{patch_embedding.1} parent=0 // loop_body
    %s13 = ssub.s32 %s8, 1
    %s14 = ssub.s32 %s8, 2
    %s21 = sadd.s32 1, %s16
    %p22 = scmp.ge.s32.totalorder %s21, 2
    %s23 = scalar_select %p22, 0, %s21
    %s24 = sadd.s32 1, %s15
    %s25 = scalar_select %p22, %s24, %s15
    %p26 = scmp.ge.s32.totalorder %s25, 1
    %s27 = scalar_select %p26, 0, %s25
    %s28 = ssub.s32 %s16, %s23
    %s29 = ssub.s32 %s15, %s27
    %s30 = sor.u32 %s28, %s29
    %p31 = scmp.eq.s32.totalorder %s30, 0
    %s33 = sadd.s32 %s32, 1
    %s34 = scalar_select %p31, %s32, %s33
    %p37 = pneg %p31
    %p38 = scmp.eq.s32.totalorder %s8, 1
    %p39 = por %p37, %p38
    %p40 = scmp.ne.s32.totalorder %s32, %s35
    %p41 = scmp.eq.s32.totalorder %s8, 0
    %p42 = por %p40, %p41
    %p43 = scmp.ne.s32.totalorder %s32, %s35
    %p44 = scmp.eq.s32.totalorder %s13, 1
    %p45 = por %p43, %p44
    %p46 = scmp.ne.s32.totalorder %s35, %s36
    %p47 = scmp.eq.s32.totalorder %s13, 0
    %p48 = por %p46, %p47
    %p49 = scmp.ne.s32.totalorder %s35, %s36
    %p50 = scmp.eq.s32.totalorder %s14, 1
    %p51 = por %p49, %p50
    %p53 = scmp.ne.s32.totalorder %s36, %s52
    %p54 = scmp.eq.s32.totalorder %s14, 0
    %p55 = por %p53, %p54
    %s56 = ssub.s32 %s15, %s27
    %p57 = scmp.eq.s32.totalorder %s56, 0
    %s59 = sadd.s32 %s58, 1
    %s60 = scalar_select %p57, %s58, %s59
    %p63 = pneg %p57
    %p64 = scmp.eq.s32.totalorder %s8, 1
    %p65 = por %p63, %p64
    %p66 = scmp.ne.s32.totalorder %s58, %s61
    %p67 = scmp.eq.s32.totalorder %s8, 0
    %p68 = por %p66, %p67
    %p69 = scmp.ne.s32.totalorder %s58, %s61
    %p70 = scmp.eq.s32.totalorder %s13, 1
    %p71 = por %p69, %p70
    %p72 = scmp.ne.s32.totalorder %s61, %s62
    %p73 = scmp.eq.s32.totalorder %s13, 0
    %p74 = por %p72, %p73
    %p75 = scmp.ne.s32.totalorder %s61, %s62
    %p76 = scmp.eq.s32.totalorder %s14, 1
    %p77 = por %p75, %p76
    %p79 = scmp.ne.s32.totalorder %s62, %s78
    %p80 = scmp.eq.s32.totalorder %s14, 0
    %p81 = por %p79, %p80
    %s82 = ssub.s32 %s16, %s23
    %s83 = ssub.s32 %s15, %s27
    %s84 = sor.u32 %s82, %s83
    %p85 = scmp.eq.s32.totalorder %s84, 0
    %s87 = sadd.s32 %s86, 1
    %s88 = scalar_select %p85, %s86, %s87
    %p91 = pneg %p85
    %p92 = scmp.eq.s32.totalorder %s8, 1
    %p93 = por %p91, %p92
    %p94 = scmp.ne.s32.totalorder %s86, %s89
    %p95 = scmp.eq.s32.totalorder %s8, 0
    %p96 = por %p94, %p95
    %p97 = scmp.ne.s32.totalorder %s86, %s89
    %p98 = scmp.eq.s32.totalorder %s13, 1
    %p99 = por %p97, %p98
    %p100 = scmp.ne.s32.totalorder %s89, %s90
    %p101 = scmp.eq.s32.totalorder %s13, 0
    %p102 = por %p100, %p101
    %p103 = scmp.ne.s32.totalorder %s89, %s90
    %p104 = scmp.eq.s32.totalorder %s14, 1
    %p105 = por %p103, %p104
    %p107 = scmp.ne.s32.totalorder %s90, %s106
    %p108 = scmp.eq.s32.totalorder %s14, 0
    %p109 = por %p107, %p108
    %p110 = scmp.le.s32.totalorder 1, %s8
    %p111 = scmp.lt.s32.totalorder %s8, 3
    %p112 = pnand %p110, %p111
    %p113 = pneg %p112
    // Predicated region
    $region9: #{patch_embedding.1} parent=5 // pred_check
      _
    $region10: #{patch_embedding.1} parent=5 // pred_check_branch
      %115 = sbr.rel (%p112) target = $region12
    $region11: #{patch_embedding.1} parent=5 // pred_region
      %s116 = ssub.s32 %s8, 1
      // Predicated region
      $region13: #{patch_embedding.1} parent=11 // pred_check
        %p117 = pneg %p74
      $region14: #{patch_embedding.1} parent=11 // pred_check_branch
        %119 = sbr.rel (%p117) target = $region16
      $region15: #{patch_embedding.1} parent=11 // pred_region
        %s120 = smul.u32 2, %s17
        %p121 = scmp.lt.s32.totalorder %s120, 1
        %s122 = scalar_select %p121, %s120, 1
        %s123 = smul.addr %s122, 8
        %s124 = scalar_lea.vmem %s1, %s123
        %s125 = smul.u32 2, %s17
      $region16: #{patch_embedding.1} parent=11 // pred_fallthru
        _
    $region12: #{patch_embedding.1} parent=5 // pred_fallthru
      _
    %p126 = scmp.lt.s32.totalorder %s8, 2
    // Predicated region
    $region17: #{patch_embedding.1} parent=5 // pred_check
      %p127 = pneg %p126
    $region18: #{patch_embedding.1} parent=5 // pred_check_branch
      %129 = sbr.rel (%p127) target = $region20
    $region19: #{patch_embedding.1} parent=5 // pred_region
      // Predicated region
      $region21: #{patch_embedding.1} parent=19 // pred_check
        %p130 = pneg %p42
      $region22: #{patch_embedding.1} parent=19 // pred_check_branch
        %132 = sbr.rel (%p130) target = $region24
      $region23: #{patch_embedding.1} parent=19 // pred_region
        %s133 = smul.u32 2, %s15
        %p134 = scmp.lt.s32.totalorder %s16, 1
        %s135 = scalar_select %p134, %s16, 1
        %p136 = scmp.lt.s32.totalorder %s133, 1
        %s137 = scalar_select %p136, %s133, 1
        %s138 = smul.addr %s135, 2
        %s139 = sadd.s32 %s137, %s138
        %s140 = smul.addr %s139, 8
        %s141 = scalar_lea.vmem %s0, %s140
        %s142 = smul.u32 2, %s15
      $region24: #{patch_embedding.1} parent=19 // pred_fallthru
        _
    $region20: #{patch_embedding.1} parent=5 // pred_fallthru
      _
    %p143 = scmp.le.s32.totalorder 1, %s8
    %p144 = scmp.lt.s32.totalorder %s8, 3
    %p145 = pnand %p143, %p144
    %p146 = pneg %p145
    // Predicated region
    $region25: #{patch_embedding.1} parent=5 // pred_check
      _
    $region26: #{patch_embedding.1} parent=5 // pred_check_branch
      %148 = sbr.rel (%p145) target = $region28
    $region27: #{patch_embedding.1} parent=5 // pred_region
      %s149 = ssub.s32 %s8, 1
      %s150 = smul.u32 2, %s17
      %p151 = scmp.lt.s32.totalorder %s18, 1
      %s152 = scalar_select %p151, %s18, 1
      %p153 = scmp.lt.s32.totalorder %s150, 1
      %s154 = scalar_select %p153, %s150, 1
      %s155 = smul.addr %s152, 2
      %s156 = sadd.s32 %s154, %s155
      %s157 = smul.addr %s156, 8
      %s158 = scalar_lea.vmem %s0, %s157
      %p159 = pneg %p48
      %p160 = pneg %p45
      %s161 = smul.u32 2, %s17
      %p162 = scmp.lt.s32.totalorder %s161, 1
      %s163 = scalar_select %p162, %s161, 1
      %s164 = smul.addr %s163, 8
      %s165 = scalar_lea.vmem %s1, %s164
      %p166 = pneg %p74
      %p167 = pneg %p71
      %p168 = pneg %p102
      %p169 = pneg %p99
      %s170 = smul.u32 2, %s17
      %p171 = scmp.lt.s32.totalorder %s18, 1
      %s172 = scalar_select %p171, %s18, 1
      %p173 = scmp.lt.s32.totalorder %s170, 1
      %s174 = scalar_select %p173, %s170, 1
      %s175 = smul.addr %s172, 2
      %s176 = sadd.s32 %s174, %s175
      %s177 = smul.addr %s176, 8
      %s178 = scalar_lea.vmem %s2, %s177
      %s179 = smul.u32 2, %s17
      %p180 = scmp.lt.s32.totalorder %s18, 1
      %s181 = scalar_select %p180, %s18, 1
      %p182 = scmp.lt.s32.totalorder %s179, 1
      %s183 = scalar_select %p182, %s179, 1
      %s184 = smul.addr %s181, 2
      %s185 = sadd.s32 %s183, %s184
      %s186 = smul.addr %s185, 8
      %s187 = scalar_lea.vmem %s0, %s186
      %s188 = smul.u32 2, %s17
      %s189 = smul.u32 2, %s17
      %p190 = scmp.lt.s32.totalorder %s189, 1
      %s191 = scalar_select %p190, %s189, 1
      %s192 = smul.addr %s191, 8
      %s193 = scalar_lea.vmem %s1, %s192
      %s194 = smul.u32 2, %s17
      %s195 = smul.u32 2, %s17
      %p196 = scmp.lt.s32.totalorder %s18, 1
      %s197 = scalar_select %p196, %s18, 1
      %p198 = scmp.lt.s32.totalorder %s195, 1
      %s199 = scalar_select %p198, %s195, 1
      %s200 = smul.addr %s197, 2
      %s201 = sadd.s32 %s199, %s200
      %s202 = smul.addr %s201, 8
      %s203 = scalar_lea.vmem %s2, %s202
      %s204 = smul.u32 2, %s17
      %v205 = vld [vmem:[%s187] sm:$0xff]
      %v206 = vld [vmem:[%s187 + $0x8] sm:$0xff]
      %v207 = vld [vmem:[%s193] sm:$0xff]
      %v208 = vld [vmem:[%s193 + $0x8] sm:$0xff]
      %v209 = vadd.f32 %v205, %v207
      %v210 = vadd.f32 %v206, %v208
      %211 = vst [vmem:[%s203] sm:$0xff] %v209
      %212 = vst [vmem:[%s203 + $0x8] sm:$0xff] %v210
      %s213 = smul.u32 2, %s17
      %p214 = scmp.lt.s32.totalorder %s18, 1
      %s215 = scalar_select %p214, %s18, 1
      %p216 = scmp.lt.s32.totalorder %s213, 1
      %s217 = scalar_select %p216, %s213, 1
      %s218 = smul.addr %s215, 2
      %s219 = sadd.s32 %s217, %s218
      %s220 = smul.addr %s219, 8
      %s221 = scalar_lea.vmem %s2, %s220
      // Predicated region
      $region29: #{patch_embedding.1} parent=27 // pred_check
        %p222 = pneg %p99
      $region30: #{patch_embedding.1} parent=27 // pred_check_branch
        %224 = sbr.rel (%p222) target = $region32
      $region31: #{patch_embedding.1} parent=27 // pred_region
        %s225 = smul.u32 2, %s17
      $region32: #{patch_embedding.1} parent=27 // pred_fallthru
        _
    $region28: #{patch_embedding.1} parent=5 // pred_fallthru
      _
    %p226 = scmp.le.s32.totalorder 2, %s8
    // Predicated region
    $region33: #{patch_embedding.1} parent=5 // pred_check
      %p227 = pneg %p226
    $region34: #{patch_embedding.1} parent=5 // pred_check_branch
      %229 = sbr.rel (%p227) target = $region36
    $region35: #{patch_embedding.1} parent=5 // pred_region
      %s230 = ssub.s32 %s8, 2
      // Predicated region
      $region37: #{patch_embedding.1} parent=35 // pred_check
        %p231 = pneg %p105
      $region38: #{patch_embedding.1} parent=35 // pred_check_branch
        %233 = sbr.rel (%p231) target = $region40
      $region39: #{patch_embedding.1} parent=35 // pred_region
        %s234 = smul.u32 2, %s19
        %p235 = scmp.lt.s32.totalorder %s20, 1
        %s236 = scalar_select %p235, %s20, 1
        %p237 = scmp.lt.s32.totalorder %s234, 1
        %s238 = scalar_select %p237, %s234, 1
        %s239 = smul.addr %s236, 2
        %s240 = sadd.s32 %s238, %s239
        %s241 = smul.addr %s240, 8
        %s242 = scalar_lea.vmem %s2, %s241
      $region40: #{patch_embedding.1} parent=35 // pred_fallthru
        _
    $region36: #{patch_embedding.1} parent=5 // pred_fallthru
      _
  $region6: #{patch_embedding.1} parent=0 // loop_footer
    %s12 = sadd.s32 1, %s8
  $region7: #{patch_embedding.1} parent=0 // loop_footer_branch
    %7 = sbr.rel target = $region3
  $region8: #{patch_embedding.1} parent=0 // loop_exit
    _

</llo_original>
